<compile_context>
chip_gen: v6e
topology: v6e:2x2x1
jax: 0.10.0
libtpu: 0.0.40
codegen_flags: <defaults>
</compile_context>

<pallas_src>
import functools

import jax
import jax.numpy as jnp
from jax import lax
from jax.experimental import pallas as pl
from jax.experimental.pallas import tpu as pltpu


def _round_up(x, m):
    return ((x + m - 1) // m) * m


@functools.lru_cache(maxsize=None)
def _vmem_capacity_bytes():
    """Per-TensorCore VMEM (128 MiB on v5e/v6e, 64 MiB on v7x)."""
    try:
        return int(pltpu.get_tpu_info().vmem_capacity_bytes)
    except Exception:
        return 64 * 1024 * 1024  # conservative (v7x-sized) fallback


def _choose_tile_b(batch, n, x_itemsize, vmem_bytes):
    """VMEM-budget-driven, generation-aware batch tile.

    Per grid step the kernel holds ~2 double-buffered x tiles plus up to ~2
    f32 full-tile temporaries (the f32 upcast of x and its square), so the
    tile is sized from a per-step budget of ~48 MiB on v5e/v6e (128 MiB VMEM)
    and ~24 MiB on v7x (64 MiB VMEM).
    """
    # TODO(synk): for very wide feature dims (n so large that even a (128, n)
    # f32 tile exceeds VMEM) add an n-axis "arbitrary" grid dimension with a
    # (1, TILE_B) f32 accumulator in scratch.
    step_budget = (48 if vmem_bytes >= 100 * 2**20 else 24) * 2**20
    bytes_per_row = n * (2 * x_itemsize + 8)
    tile = max(128, (step_budget // bytes_per_row) // 128 * 128)
    # Keep >= ~8 grid steps when the batch allows it so both v7x TensorCores
    # still get several pipelined (prefetch/compute-overlapped) steps.
    tile = min(tile, max(128, _round_up(pl.cdiv(batch, 8), 128)))
    if tile >= batch:
        # Single block; block_shape == full array dims is always a legal TPU
        # tiling, so odd batch sizes need no padding.
        return batch
    return tile


def _fm_kernel(x_ref, wall_ref, s_ref, b_ref, o_ref):
    """One batch tile of the FM forward pass.

    x_ref    : (TILE_B, n) VMEM  input rows (compute dtype: f32 or bf16)
    wall_ref : (KP, n)     VMEM  [w ; v^T ; zero-pad] stacked weights (resident)
    s_ref    : (1, n)      VMEM  0.5 * sum_k v[n, k]^2, f32 (resident)
    b_ref    : (1, 1)      SMEM  linear bias scalar
    o_ref    : (1, TILE_B) VMEM  lane-dense output row for this tile
    """
    x = x_ref[...]

    # Single MXU contraction over the shared minor dim (the A @ B^T /
    # flash-attention q@k^T pattern): no relayout of the big x tile, and the
    # batch dim lands on lanes.  Row 0 is the linear term, rows 1..k are
    # ip1^T = v^T x^T, zero-padded rows contribute exactly 0.
    r = lax.dot_general(
        wall_ref[...], x,
        dimension_numbers=(((1,), (1,)), ((), ())),
        preferred_element_type=jnp.float32)                  # (KP, TILE_B) f32

    lin = r[0:1, :]                                          # (1, TILE_B)
    # 0.5 * sum_k ip1^2; the linear row (and the zero pad rows) are removed
    # via "- lin*lin" so no unaligned sublane slice of r is needed.
    sumsq = jnp.sum(r * r, axis=0, keepdims=True)            # (1, TILE_B)
    pair = 0.5 * (sumsq - lin * lin)

    # 0.5 * sum_n (sum_k v_nk^2) * x_bn^2 : the reference's (x^2)@(v^2) matmul
    # folded into one precomputed f32 row `s` (cheap M=1 contraction).
    xf = x.astype(jnp.float32)
    quad = lax.dot_general(
        s_ref[...], xf * xf,
        dimension_numbers=(((1,), (1,)), ((), ())),
        preferred_element_type=jnp.float32)                  # (1, TILE_B)

    o_ref[...] = (lin - quad + pair + b_ref[0, 0]).astype(o_ref.dtype)


@functools.partial(jax.jit, static_argnames=("compute_dtype",))
def fm_forward(x, w, b, v, compute_dtype=jnp.float32):
    """FM forward. x: (B, n), w: (1, n) torch-Linear weight, b: (1,), v: (n, k).

    Returns (B, 1) f32, matching FM_model.forward.  compute_dtype=bf16 streams
    x and the stacked weights in bf16 (halves HBM bytes of the dominant x
    stream; v6e/v7x lever) while keeping s and all accumulation in f32.
    """
    batch, n = x.shape
    k = v.shape[1]

    vmem_bytes = _vmem_capacity_bytes()
    x_itemsize = jnp.dtype(compute_dtype).itemsize
    tile_b = _choose_tile_b(batch, n, x_itemsize, vmem_bytes)
    grid = (pl.cdiv(batch, tile_b),)        # ragged edge block, no jnp.pad of x

    x_c = x.astype(compute_dtype)

    v_f32 = v.astype(jnp.float32)
    w_row = w.reshape(1, n).astype(jnp.float32)
    # Stack the linear weight on top of v^T -> one MXU pass instead of two;
    # zero-pad rows to a multiple of 8 (zero rows contribute exactly 0).
    kp = _round_up(k + 1, 8)
    w_all = jnp.concatenate([w_row, v_f32.T], axis=0)
    if kp != k + 1:
        w_all = jnp.pad(w_all, ((0, kp - (k + 1)), (0, 0)))
    w_all = w_all.astype(compute_dtype)                              # (kp, n)

    s_row = (0.5 * jnp.sum(v_f32 * v_f32, axis=1)).reshape(1, n)     # (1, n) f32
    bias = b.reshape(1, 1).astype(jnp.float32)                       # (1, 1) SMEM

    vmem_limit = (96 if vmem_bytes >= 100 * 2**20 else 48) * 2**20

    cost = pl.CostEstimate(
        flops=2 * batch * n * (kp + 1) + 6 * batch * n,
        transcendentals=0,
        bytes_accessed=batch * n * x_itemsize + 4 * batch + (kp + 1) * n * 4,
    )

    out_row = pl.pallas_call(
        _fm_kernel,
        out_shape=jax.ShapeDtypeStruct((1, batch), jnp.float32),
        grid_spec=pltpu.PrefetchScalarGridSpec(
            num_scalar_prefetch=0,
            grid=grid,
            in_specs=[
                pl.BlockSpec((tile_b, n), lambda i: (i, 0)),     # x batch tile (streamed)
                pl.BlockSpec((kp, n), lambda i: (0, 0)),         # [w; v^T] (resident)
                pl.BlockSpec((1, n), lambda i: (0, 0)),          # s row (resident, f32)
                pl.BlockSpec((1, 1), lambda i: (0, 0),
                             memory_space=pltpu.MemorySpace.SMEM),  # bias scalar
            ],
            out_specs=pl.BlockSpec((1, tile_b), lambda i: (0, i)),  # lane-dense row
        ),
        compiler_params=pltpu.CompilerParams(
            dimension_semantics=("parallel",),
            vmem_limit_bytes=vmem_limit,
        ),
        cost_estimate=cost,
    )(x_c, w_all, s_row, bias)

    return out_row.reshape(batch, 1)


def fm_reference(x, w, b, v):
    linear_part = x @ w.T + b.reshape(1, 1)
    ip1 = x @ v
    ip2 = (x * x) @ (v * v)
    inter = 0.5 * jnp.sum(ip1 * ip1 - ip2, axis=1, keepdims=True)
    return linear_part + inter


def _run_case(key, batch, n, k, compute_dtype, tol_rel):
    kx, kw, kb, kv = jax.random.split(key, 4)
    bound = 1.0 / (n ** 0.5)
    x = jax.random.normal(kx, (batch, n), dtype=jnp.float32)
    w = jax.random.uniform(kw, (1, n), jnp.float32, -bound, bound)
    b = jax.random.uniform(kb, (1,), jnp.float32, -bound, bound)
    v = jax.random.uniform(kv, (n, k), dtype=jnp.float32)

    if compute_dtype == jnp.bfloat16:
        # Pre-quantize so the f32 reference is computed from exactly the
        # values the bf16 kernel sees (isolates kernel error from the
        # quantization the caller opted into).
        x = x.astype(jnp.bfloat16).astype(jnp.float32)
        w = w.astype(jnp.bfloat16).astype(jnp.float32)
        v = v.astype(jnp.bfloat16).astype(jnp.float32)

    out = jax.block_until_ready(
        fm_forward(x, w, b, v, compute_dtype=compute_dtype))
    ref = fm_reference(x, w, b, v)
    assert out.shape == (batch, 1), out.shape
    scale = max(1.0, float(jnp.max(jnp.abs(ref))))
    max_err = float(jnp.max(jnp.abs(out - ref)))
    assert max_err <= tol_rel * scale, (
        f"mismatch batch={batch} n={n} k={k} dtype={compute_dtype.__name__}: "
        f"max abs err {max_err} vs scale {scale}")


if __name__ == "__main__":
    key = jax.random.PRNGKey(0)
    k1, k2, k3 = jax.random.split(key, 3)
    # Small shape consistent with the module (single full-array block).
    _run_case(k1, batch=8, n=32, k=16, compute_dtype=jnp.float32, tol_rel=1e-4)
    # Multi-step batch grid with a ragged last block (1152 = 4*256 + 128):
    # exercises the cdiv grid and masked edge-block handling (no x padding).
    _run_case(k2, batch=1152, n=128, k=32, compute_dtype=jnp.float32, tol_rel=1e-3)
    # bf16-streamed x / stacked weights (the v6e/v7x HBM-roofline lever);
    # s row and accumulation stay f32.
    _run_case(k3, batch=1152, n=128, k=32, compute_dtype=jnp.bfloat16, tol_rel=5e-3)
    print("KERNEL_OK")
</pallas_src>

<mosaic_0001>
module attributes {stable_mosaic.version = 11 : i64} {
  func.func @_fm_kernel(%arg0: i32, %arg1: memref<8x32xf32, #tpu.memory_space<vmem>>, %arg2: memref<24x32xf32, #tpu.memory_space<vmem>>, %arg3: memref<1x32xf32, #tpu.memory_space<vmem>>, %arg4: memref<1x1xf32, #tpu.memory_space<smem>>, %arg5: memref<1x8xf32, #tpu.memory_space<vmem>>) attributes {dimension_semantics = [#tpu.dimension_semantics<parallel>], iteration_bounds = array<i64: 1>, scalar_prefetch = 0 : i64, scratch_operands = 0 : i64, tpu.core_type = #tpu.core_type<tc>, window_params = [{transform_indices = @transform_0, window_bounds = array<i64: 8, 32>}, {pipeline_mode = #tpu.pipeline_mode<synchronous>, transform_indices = @transform_1, window_bounds = array<i64: 24, 32>}, {pipeline_mode = #tpu.pipeline_mode<synchronous>, transform_indices = @transform_2, window_bounds = array<i64: 1, 32>}, {transform_indices = @transform_3, window_bounds = array<i64: 1, 1>}, {transform_indices = @transform_4, window_bounds = array<i64: 1, 8>}]} {
    %c0 = arith.constant 0 : index
    %c0_0 = arith.constant 0 : index
    %0 = vector.load %arg1[%c0, %c0_0] : memref<8x32xf32, #tpu.memory_space<vmem>>, vector<8x32xf32>
    %c0_1 = arith.constant 0 : index
    %c0_2 = arith.constant 0 : index
    %1 = vector.load %arg2[%c0_1, %c0_2] : memref<24x32xf32, #tpu.memory_space<vmem>>, vector<24x32xf32>
    %cst = arith.constant dense<0.000000e+00> : vector<24x8xf32>
    %2 = tpu.matmul %1, %0, %cst {dimension_numbers = #tpu.dot_dimension_numbers<[1], [1], [0], [0], [0, 0, 1, 0], [], []>} : vector<24x32xf32>, vector<8x32xf32>, vector<24x8xf32> -> vector<24x8xf32>
    %3 = vector.extract_strided_slice %2 {offsets = [0, 0], sizes = [1, 8], strides = [1, 1]} : vector<24x8xf32> to vector<1x8xf32>
    %4 = arith.mulf %2, %2 : vector<24x8xf32>
    %cst_3 = arith.constant dense<0.000000e+00> : vector<8xf32>
    %5 = vector.multi_reduction <add>, %4, %cst_3 [0] : vector<24x8xf32> to vector<8xf32>
    %6 = vector.shape_cast %5 : vector<8xf32> to vector<1x8xf32>
    %7 = arith.mulf %3, %3 : vector<1x8xf32>
    %8 = arith.subf %6, %7 : vector<1x8xf32>
    %cst_4 = arith.constant 5.000000e-01 : f32
    %9 = vector.broadcast %cst_4 : f32 to vector<1x8xf32>
    %10 = arith.mulf %9, %8 : vector<1x8xf32>
    %c0_5 = arith.constant 0 : index
    %c0_6 = arith.constant 0 : index
    %11 = vector.load %arg3[%c0_5, %c0_6] : memref<1x32xf32, #tpu.memory_space<vmem>>, vector<1x32xf32>
    %12 = arith.mulf %0, %0 : vector<8x32xf32>
    %cst_7 = arith.constant dense<0.000000e+00> : vector<1x8xf32>
    %13 = tpu.matmul %11, %12, %cst_7 {dimension_numbers = #tpu.dot_dimension_numbers<[1], [1], [0], [0], [0, 0, 1, 0], [], []>} : vector<1x32xf32>, vector<8x32xf32>, vector<1x8xf32> -> vector<1x8xf32>
    %14 = arith.subf %3, %13 : vector<1x8xf32>
    %15 = arith.addf %14, %10 : vector<1x8xf32>
    %c0_8 = arith.constant 0 : index
    %c0_9 = arith.constant 0 : index
    %16 = memref.load %arg4[%c0_8, %c0_9] : memref<1x1xf32, #tpu.memory_space<smem>>
    %17 = vector.broadcast %16 : f32 to vector<1x8xf32>
    %18 = arith.addf %15, %17 : vector<1x8xf32>
    %c0_10 = arith.constant 0 : index
    %c0_11 = arith.constant 0 : index
    %19 = vector.load %arg5[%c0_10, %c0_11] : memref<1x8xf32, #tpu.memory_space<vmem>>, vector<1x8xf32>
    tpu.vector_store %arg5[%c0_10, %c0_11], %18 {strides = array<i32>} : memref<1x8xf32, #tpu.memory_space<vmem>>, vector<1x8xf32>,
    return
  }
  func.func @transform_0(%arg0: i32) -> (i32, i32) {
    %c0_i32 = arith.constant 0 : i32
    %c0_i32_0 = arith.constant 0 : i32
    return %arg0, %c0_i32 : i32, i32
  }
  func.func @transform_1(%arg0: i32) -> (i32, i32) {
    %c0_i32 = arith.constant 0 : i32
    %c0_i32_0 = arith.constant 0 : i32
    %c0_i32_1 = arith.constant 0 : i32
    return %c0_i32, %c0_i32_0 : i32, i32
  }
  func.func @transform_2(%arg0: i32) -> (i32, i32) {
    %c0_i32 = arith.constant 0 : i32
    %c0_i32_0 = arith.constant 0 : i32
    %c0_i32_1 = arith.constant 0 : i32
    return %c0_i32, %c0_i32_0 : i32, i32
  }
  func.func @transform_3(%arg0: i32) -> (i32, i32) {
    %c0_i32 = arith.constant 0 : i32
    %c0_i32_0 = arith.constant 0 : i32
    %c0_i32_1 = arith.constant 0 : i32
    return %c0_i32, %c0_i32_0 : i32, i32
  }
  func.func @transform_4(%arg0: i32) -> (i32, i32) {
    %c0_i32 = arith.constant 0 : i32
    %c0_i32_0 = arith.constant 0 : i32
    return %c0_i32, %arg0 : i32, i32
  }
}

</mosaic_0001>

<llo_original>
// kernel: fm_forward.1
$region0: #{fm_forward.1}
  #allocation0 [shape = 'u32[]', space=smem, size = 0x4, offset = 0x4, fixed_abs, tag = 'smem constant byte address 0x4 - core index']
  #allocation1 [shape = 'u32[144,128]{1,0:T(1,128)}', space=vmem, size = 0x12000, scoped, tag = 'internal scratch']
  #allocation2 [shape = 'f32[1,1]{1,0:T(1,128)S(6)}', space=smem, size = 0x200, scoped, tag = 'scoped memory for fm_forward.1']
  %s0 = inlined_call_operand.vmem [shape: f32[8,32], index: 0, kind: input, shape index: {}]
  %s1 = inlined_call_operand.vmem [shape: f32[24,32], index: 1, kind: input, shape index: {}]
  %s2 = inlined_call_operand.vmem [shape: f32[1,32], index: 2, kind: input, shape index: {}]
  %s3 = inlined_call_operand.<no memory space> [shape: f32[1,1], index: 3, kind: input, shape index: {}]
  %s4 = inlined_call_operand.hbm [shape: f32[1,8], index: 4, kind: output, shape index: {}]
  %s5 = sld [smem:[#allocation0]]
  $region26: #{fm_forward.1} parent=0
    _
  %s7 = ssub.s32 1, %s5
  %s8 = scalar_select 0, %s7, %s5
  %9 = sst [smem:[#allocation2]] %s3
  $region1: #{fm_forward.1} parent=0
    #allocation3 [shape = 'u8[512]{0}', space=vmem, size = 0x400, scoped, tag = 'output window, operand 0, single buffered']
    #allocation4 [shape = 's32[1]{0}', space=sflag, size = 0x4, scoped, tag = 'scoped memory for fm_forward.1']
    %10 = vsyncpa [#allocation4], 0
    // Predicated region
    $region2: #{fm_forward.1} parent=1 // pred_check
      _
    $region3: #{fm_forward.1} parent=1 // pred_check_branch
      %12 = sbr.rel (0) target = $region5
    $region4: #{fm_forward.1} parent=1 // pred_region
      _
    $region5: #{fm_forward.1} parent=1 // pred_fallthru
      _
    // Predicated region
    $region6: #{fm_forward.1} parent=1 // pred_check
      _
    $region7: #{fm_forward.1} parent=1 // pred_check_branch
      %14 = sbr.rel (0) target = $region9
    $region8: #{fm_forward.1} parent=1 // pred_region
      _
    $region9: #{fm_forward.1} parent=1 // pred_fallthru
      _
    // Predicated region
    $region10: #{fm_forward.1} parent=1 // pred_check
      _
    $region11: #{fm_forward.1} parent=1 // pred_check_branch
      %16 = sbr.rel (0) target = $region13
    $region12: #{fm_forward.1} parent=1 // pred_region
      _
    $region13: #{fm_forward.1} parent=1 // pred_fallthru
      _
    // Predicated region
    $region14: #{fm_forward.1} parent=1 // pred_check
      _
    $region15: #{fm_forward.1} parent=1 // pred_check_branch
      %18 = sbr.rel (0) target = $region17
    $region16: #{fm_forward.1} parent=1 // pred_region
      _
    $region17: #{fm_forward.1} parent=1 // pred_fallthru
      _
    %v19 = vld [vmem:[%s0] sm:$0xff]
    %v20 = vld [vmem:[%s1] sm:$0xff]
    %v21 = vld [vmem:[%s1 + $0x8] sm:$0xff]
    %v22 = vld [vmem:[%s1 + $0x10] sm:$0xff]
    %vm23 = vcmask 261120
    %v25 = vsel %vm23, %v20, 0
    %v28 = vsel %vm23, %v21, 0
    %v31 = vsel %vm23, %v22, 0
    %v34 = vsel %vm23, %v19, 0
    %36 = vmatprep.subr.mxu0 0.0
    %37 = vmatpush1.xpose.msra.mxu0 0.0
    %38 = vmatprep.subr.mxu0 0.0
    %39 = vmatpush1.xpose.msra.mxu0 0.0
    %40 = vmatprep.subr.mxu0 0.0
    %41 = vmatpush1.xpose.msra.mxu0 0.0
    %42 = vmatprep.subr.mxu0 0.0
    %43 = vmatpush1.xpose.msra.mxu0 0.0
    %44 = vmatprep.subr.mxu0 0.0
    %45 = vmatpush1.xpose.msra.mxu0 0.0
    %46 = vmatprep.subr.mxu0 0.0
    %47 = vmatpush1.xpose.msra.mxu0 0.0
    %48 = vmatprep.subr.mxu0 0.0
    %49 = vmatpush1.xpose.msra.mxu0 0.0
    %50 = vmatprep.subr.mxu0 0.0
    %51 = vmatpush1.xpose.msra.mxu0 0.0
    %52 = vmatprep.subr.mxu0 0.0
    %53 = vmatpush1.xpose.msra.mxu0 0.0
    %54 = vmatprep.subr.mxu0 0.0
    %55 = vmatpush1.xpose.msra.mxu0 0.0
    %56 = vmatprep.subr.mxu0 0.0
    %57 = vmatpush1.xpose.msra.mxu0 0.0
    %58 = vmatprep.subr.mxu0 0.0
    %59 = vmatpush1.xpose.msra.mxu0 0.0
    %60 = vmatprep.subr.mxu0 0.0
    %61 = vmatpush1.xpose.msra.mxu0 0.0
    %62 = vmatprep.subr.mxu0 0.0
    %63 = vmatpush1.xpose.msra.mxu0 0.0
    %64 = vmatprep.subr.mxu0 0.0
    %65 = vmatpush1.xpose.msra.mxu0 0.0
    %66 = vmatprep.subr.mxu0 0.0
    %67 = vmatpush1.xpose.msra.mxu0 %v34
    %68 = vmatprep.subr.mxu0 0.0
    %69 = vmatpush2.xpose.msra.mxu0 0.0
    %70 = vmatprep.subr.mxu0 0.0
    %71 = vmatpush2.xpose.msra.mxu0 0.0
    %72 = vmatprep.subr.mxu0 0.0
    %73 = vmatpush2.xpose.msra.mxu0 0.0
    %74 = vmatprep.subr.mxu0 0.0
    %75 = vmatpush2.xpose.msra.mxu0 0.0
    %76 = vmatprep.subr.mxu0 0.0
    %77 = vmatpush2.xpose.msra.mxu0 0.0
    %78 = vmatprep.subr.mxu0 0.0
    %79 = vmatpush2.xpose.msra.mxu0 0.0
    %80 = vmatprep.subr.mxu0 0.0
    %81 = vmatpush2.xpose.msra.mxu0 0.0
    %82 = vmatprep.subr.mxu0 0.0
    %83 = vmatpush2.xpose.msra.mxu0 0.0
    %84 = vmatprep.subr.mxu0 0.0
    %85 = vmatpush2.xpose.msra.mxu0 0.0
    %86 = vmatprep.subr.mxu0 0.0
    %87 = vmatpush2.xpose.msra.mxu0 0.0
    %88 = vmatprep.subr.mxu0 0.0
    %89 = vmatpush2.xpose.msra.mxu0 0.0
    %90 = vmatprep.subr.mxu0 0.0
    %91 = vmatpush2.xpose.msra.mxu0 0.0
    %92 = vmatprep.subr.mxu0 0.0
    %93 = vmatpush2.xpose.msra.mxu0 0.0
    %94 = vmatprep.subr.mxu0 0.0
    %95 = vmatpush2.xpose.msra.mxu0 0.0
    %96 = vmatprep.subr.mxu0 0.0
    %97 = vmatpush2.xpose.msra.mxu0 0.0
    %98 = vmatprep.subr.mxu0 0.0
    %99 = vmatpush2.xpose.msra.mxu0 0.0
    %100 = vmatprep.mubr.f32.mxu0 0.0
    %101 = vmatmul.mubr.f32.gmra.mxu0 %v25
    %v102 = vpop.f32.mrf.mxu0
    %v103 = vadd.f32 0.0, %v102
    %v104 = vpop.f32.mrf.mxu0
    %105 = vmatprep.mubr.f32.mxu0 0.0
    %106 = vmatmul.mubr.f32.gmra.mxu0 %v28
    %v107 = vpop.f32.mrf.mxu0
    %v108 = vadd.f32 0.0, %v107
    %v109 = vpop.f32.mrf.mxu0
    %110 = vmatprep.mubr.f32.mxu0 0.0
    %111 = vmatmul.mubr.f32.gmra.mxu0 %v31
    %v112 = vpop.f32.mrf.mxu0
    %v113 = vadd.f32 0.0, %v112
    %v114 = vpop.f32.mrf.mxu0
    %115 = vdwg.mxu0
    %v116 = vmul.f32 %v103, %v103
    %v117 = vmul.f32 %v108, %v108
    %v118 = vmul.f32 %v113, %v113
    %vm119 = vcmask 64512
    %v120 = vsel %vm119, %v116, 0.0
    %v121 = vsel %vm119, %v117, 0.0
    %v122 = vadd.f32 %v120, %v121
    %v123 = vsel %vm119, %v118, 0.0
    %v124 = vadd.f32 %v122, %v123
    %v125 = vrot.slane %v124, 4
    %v126 = vadd.f32 %v124, %v125
    %v127 = vrot.slane %v126, 2
    %v128 = vadd.f32 %v126, %v127
    %v129 = vrot.slane %v128, 1
    %v130 = vadd.f32 %v128, %v129
    %v131 = vsub.f32 %v130, %v116
    %v132 = vmul.f32 %v131, 0.5
    %v133 = vld [vmem:[%s2] sm:$0x1]
    %v134 = vmul.f32 %v19, %v19
    %v136 = vsel %vm23, %v133, 0
    %v139 = vsel %vm23, %v134, 0
    %141 = vmatprep.subr.mxu0 0.0
    %142 = vmatpush1.xpose.msra.mxu0 0.0
    %143 = vmatprep.subr.mxu0 0.0
    %144 = vmatpush1.xpose.msra.mxu0 0.0
    %145 = vmatprep.subr.mxu0 0.0
    %146 = vmatpush1.xpose.msra.mxu0 0.0
    %147 = vmatprep.subr.mxu0 0.0
    %148 = vmatpush1.xpose.msra.mxu0 0.0
    %149 = vmatprep.subr.mxu0 0.0
    %150 = vmatpush1.xpose.msra.mxu0 0.0
    %151 = vmatprep.subr.mxu0 0.0
    %152 = vmatpush1.xpose.msra.mxu0 0.0
    %153 = vmatprep.subr.mxu0 0.0
    %154 = vmatpush1.xpose.msra.mxu0 0.0
    %155 = vmatprep.subr.mxu0 0.0
    %156 = vmatpush1.xpose.msra.mxu0 0.0
    %157 = vmatprep.subr.mxu0 0.0
    %158 = vmatpush1.xpose.msra.mxu0 0.0
    %159 = vmatprep.subr.mxu0 0.0
    %160 = vmatpush1.xpose.msra.mxu0 0.0
    %161 = vmatprep.subr.mxu0 0.0
    %162 = vmatpush1.xpose.msra.mxu0 0.0
    %163 = vmatprep.subr.mxu0 0.0
    %164 = vmatpush1.xpose.msra.mxu0 0.0
    %165 = vmatprep.subr.mxu0 0.0
    %166 = vmatpush1.xpose.msra.mxu0 0.0
    %167 = vmatprep.subr.mxu0 0.0
    %168 = vmatpush1.xpose.msra.mxu0 0.0
    %169 = vmatprep.subr.mxu0 0.0
    %170 = vmatpush1.xpose.msra.mxu0 0.0
    %171 = vmatprep.subr.mxu0 0.0
    %172 = vmatpush1.xpose.msra.mxu0 %v139
    %173 = vmatprep.subr.mxu0 0.0
    %174 = vmatpush2.xpose.msra.mxu0 0.0
    %175 = vmatprep.subr.mxu0 0.0
    %176 = vmatpush2.xpose.msra.mxu0 0.0
    %177 = vmatprep.subr.mxu0 0.0
    %178 = vmatpush2.xpose.msra.mxu0 0.0
    %179 = vmatprep.subr.mxu0 0.0
    %180 = vmatpush2.xpose.msra.mxu0 0.0
    %181 = vmatprep.subr.mxu0 0.0
    %182 = vmatpush2.xpose.msra.mxu0 0.0
    %183 = vmatprep.subr.mxu0 0.0
    %184 = vmatpush2.xpose.msra.mxu0 0.0
    %185 = vmatprep.subr.mxu0 0.0
    %186 = vmatpush2.xpose.msra.mxu0 0.0
    %187 = vmatprep.subr.mxu0 0.0
    %188 = vmatpush2.xpose.msra.mxu0 0.0
    %189 = vmatprep.subr.mxu0 0.0
    %190 = vmatpush2.xpose.msra.mxu0 0.0
    %191 = vmatprep.subr.mxu0 0.0
    %192 = vmatpush2.xpose.msra.mxu0 0.0
    %193 = vmatprep.subr.mxu0 0.0
    %194 = vmatpush2.xpose.msra.mxu0 0.0
    %195 = vmatprep.subr.mxu0 0.0
    %196 = vmatpush2.xpose.msra.mxu0 0.0
    %197 = vmatprep.subr.mxu0 0.0
    %198 = vmatpush2.xpose.msra.mxu0 0.0
    %199 = vmatprep.subr.mxu0 0.0
    %200 = vmatpush2.xpose.msra.mxu0 0.0
    %201 = vmatprep.subr.mxu0 0.0
    %202 = vmatpush2.xpose.msra.mxu0 0.0
    %203 = vmatprep.subr.mxu0 0.0
    %204 = vmatpush2.xpose.msra.mxu0 0.0
    %205 = vmatprep.mubr.f32.mxu0 0.0
    %206 = vmatmul.mubr.f32.gmra.mxu0 %v136
    %v207 = vpop.f32.mrf.mxu0
    %v208 = vadd.f32 0.0, %v207
    %v209 = vpop.f32.mrf.mxu0
    %210 = vdwg.mxu0
    %v211 = vsub.f32 %v103, %v208
    %v212 = vadd.f32 %v211, %v132
    %s213 = sld [smem:[#allocation2]]
    %v214 = vstv %s213
    %v215 = vadd.f32 %v212, %v214
    %vm216 = vcmask 57344
    %217 = vst.msk [vmem:[#allocation3] sm:$0x1] %vm216, %v215
    // Predicated region
    $region18: #{fm_forward.1} parent=1 // pred_check
      _
    $region19: #{fm_forward.1} parent=1 // pred_check_branch
      %219 = sbr.rel (0) target = $region21
    $region20: #{fm_forward.1} parent=1 // pred_region
      %s221 = ssub.s32 16, 16
      %222 = vsyncadd [#allocation4], %s221
      %s224 = sshll.u32 [#allocation3], 4
      %s225 = int_to_ptr.vmem [resolvable:$true] %s224
      %227 = dma.vmem_to_hbm [thread:$0]  %s225, 16, %s4, [#allocation4]
    $region21: #{fm_forward.1} parent=1 // pred_fallthru
      _
    // Predicated region
    $region22: #{fm_forward.1} parent=1 // pred_check
      _
    $region23: #{fm_forward.1} parent=1 // pred_check_branch
      %229 = sbr.rel (0) target = $region25
    $region24: #{fm_forward.1} parent=1 // pred_region
      %230 = dma.done [#allocation4], 16
    $region25: #{fm_forward.1} parent=1 // pred_fallthru
      _
    %231 = vsyncpa [#allocation4], 1

</llo_original>
